<compile_context>
chip_gen: v7x
topology: tpu7x:2x2x1
jax: 0.10.0
libtpu: 0.0.40
codegen_flags: <defaults>
</compile_context>

<pallas_src>
import functools

import jax
import jax.numpy as jnp
from jax.experimental import pallas as pl
from jax.experimental.pallas import tpu as pltpu


def bert_self_output_kernel(x_ref, res_ref, w_ref, params_ref, o_ref, *, eps):
    # Block shapes (per grid step i):
    #   x_ref, res_ref, o_ref : (TM, H)          streamed row blocks
    #   w_ref                 : (H_out, H_in)    PyTorch Linear layout, resident
    #   params_ref            : (3, H) f32       rows = [bias, gamma, beta]
    params = params_ref[...]                     # already f32, tiny
    bias = params[0:1, :]                        # (1, H)
    gamma = params[1:2, :]                       # (1, H)
    beta = params[2:3, :]                        # (1, H)

    # dense: x @ W^T  -- contract on W's "in" axis so no wrapper transpose is
    # needed; MXU accumulates in f32.
    h = jax.lax.dot_general(
        x_ref[...], w_ref[...],
        dimension_numbers=(((1,), (1,)), ((), ())),
        preferred_element_type=jnp.float32) + bias

    # dropout: identity in eval mode (p = 0)

    # residual add (f32)
    y = h + res_ref[...].astype(jnp.float32)     # (TM, H) f32

    # LayerNorm over the hidden (lane) axis, biased variance (PyTorch style)
    mean = jnp.mean(y, axis=-1, keepdims=True)
    centered = y - mean
    var = jnp.mean(centered * centered, axis=-1, keepdims=True)
    out = centered * jax.lax.rsqrt(var + eps) * gamma + beta

    o_ref[...] = out.astype(o_ref.dtype)


def bert_self_output_forward(hidden_states, input_tensor, weight, bias,
                             ln_gamma, ln_beta, *, eps=1e-12,
                             stream_dtype=jnp.bfloat16, row_tile=512):
    """Fused BertSelfOutput forward.

    hidden_states, input_tensor : (B, T, H)
    weight                      : (H, H) PyTorch Linear layout (out, in)
    bias, ln_gamma, ln_beta     : (H,)
    """
    B, T, H = hidden_states.shape
    M = B * T
    out_dtype = hidden_states.dtype

    # Fixed row tile (sublane-aligned); the grid masks any tail block.
    TM = min(row_tile, ((M + 7) // 8) * 8)
    grid = (pl.cdiv(M, TM),)

    # Streamed operands in the (cheaper) stream dtype; params stay f32.
    x2 = hidden_states.reshape(M, H).astype(stream_dtype)
    r2 = input_tensor.reshape(M, H).astype(stream_dtype)
    # No transpose: kernel contracts on weight dim 1 directly.  The cast is a
    # no-op when the weight is already stored in stream_dtype (recommended).
    w = weight.astype(stream_dtype)
    # Stack the three per-feature vectors -> one resident (3, H) block.
    params = jnp.stack([bias, ln_gamma, ln_beta], axis=0).astype(jnp.float32)

    out_bytes = jnp.dtype(out_dtype).itemsize
    bytes_accessed = (x2.size * x2.dtype.itemsize
                      + r2.size * r2.dtype.itemsize
                      + w.size * w.dtype.itemsize
                      + params.size * params.dtype.itemsize
                      + M * H * out_bytes)
    cost = pl.CostEstimate(flops=2 * M * H * H, transcendentals=0,
                           bytes_accessed=int(bytes_accessed))

    def build(single_buffer_resident):
        row_spec = pl.BlockSpec((TM, H), lambda i: (i, 0))
        if single_buffer_resident:
            # Constant index map -> single buffer (saves VMEM, esp. on v7x).
            w_spec = pl.BlockSpec((H, H), lambda i: (0, 0),
                                  pipeline_mode=pl.Buffered(1))
            p_spec = pl.BlockSpec((3, H), lambda i: (0, 0),
                                  pipeline_mode=pl.Buffered(1))
        else:
            w_spec = pl.BlockSpec((H, H), lambda i: (0, 0))
            p_spec = pl.BlockSpec((3, H), lambda i: (0, 0))
        return pl.pallas_call(
            functools.partial(bert_self_output_kernel, eps=eps),
            out_shape=jax.ShapeDtypeStruct((M, H), out_dtype),
            grid_spec=pltpu.PrefetchScalarGridSpec(
                num_scalar_prefetch=0,
                grid=grid,
                in_specs=[row_spec, row_spec, w_spec, p_spec],
                out_specs=row_spec,
            ),
            compiler_params=pltpu.CompilerParams(
                dimension_semantics=("parallel",)),
            cost_estimate=cost,
        )

    try:
        out2 = build(True)(x2, r2, w, params)
    except Exception:
        # Fallback if this jax version rejects pipeline_mode on BlockSpec;
        # identical semantics, just default double-buffering of W/params.
        out2 = build(False)(x2, r2, w, params)

    return out2.reshape(B, T, H)


def bert_self_output_reference(hidden_states, input_tensor, weight, bias,
                               ln_gamma, ln_beta, *, eps=1e-12):
    # Pure-JAX f32 reference mirroring the PyTorch forward (dropout in eval).
    h = jnp.einsum("bth,oh->bto", hidden_states.astype(jnp.float32),
                   weight.astype(jnp.float32)) + bias.astype(jnp.float32)
    y = h + input_tensor.astype(jnp.float32)
    mean = jnp.mean(y, axis=-1, keepdims=True)
    var = jnp.mean((y - mean) ** 2, axis=-1, keepdims=True)
    out = (y - mean) * jax.lax.rsqrt(var + eps)
    out = out * ln_gamma.astype(jnp.float32) + ln_beta.astype(jnp.float32)
    return out.astype(hidden_states.dtype)


if __name__ == "__main__":
    B = 2      # batch
    T = 8      # sequence length
    H = 128    # hidden size (lane-aligned)
    EPS = 1e-12

    key = jax.random.PRNGKey(0)
    kx, kr, kw, kb, kg, kbeta = jax.random.split(key, 6)

    hidden_states = jax.random.normal(kx, (B, T, H), dtype=jnp.float32)
    input_tensor = jax.random.normal(kr, (B, T, H), dtype=jnp.float32)
    weight = jax.random.normal(kw, (H, H), dtype=jnp.float32) * (1.0 / H ** 0.5)
    bias = jax.random.normal(kb, (H,), dtype=jnp.float32) * 0.02
    ln_gamma = 1.0 + 0.1 * jax.random.normal(kg, (H,), dtype=jnp.float32)
    ln_beta = 0.02 * jax.random.normal(kbeta, (H,), dtype=jnp.float32)

    ref = bert_self_output_reference(hidden_states, input_tensor, weight, bias,
                                     ln_gamma, ln_beta, eps=EPS)

    # 1) f32-stream path: tight check against the f32 reference.
    out_f32 = bert_self_output_forward(hidden_states, input_tensor, weight,
                                       bias, ln_gamma, ln_beta, eps=EPS,
                                       stream_dtype=jnp.float32)
    out_f32 = jax.block_until_ready(out_f32)
    assert out_f32.shape == (B, T, H)
    assert jnp.allclose(out_f32, ref, atol=1e-5, rtol=1e-5), \
        "f32 path mismatch vs reference"

    # 2) default bf16-stream path (the fast one): looser tolerance is purely
    #    from bf16 input quantization, not a kernel bug.
    out_bf16 = bert_self_output_forward(hidden_states, input_tensor, weight,
                                        bias, ln_gamma, ln_beta, eps=EPS)
    out_bf16 = jax.block_until_ready(out_bf16)
    assert out_bf16.shape == (B, T, H)
    assert jnp.allclose(out_bf16, ref, atol=5e-2, rtol=5e-2), \
        "bf16 path mismatch vs reference"

    print("KERNEL_OK")
</pallas_src>

<mosaic_0001>
module attributes {stable_mosaic.version = 11 : i64} {
  func.func @bert_self_output_kernel(%arg0: i32, %arg1: memref<16x128xf32, #tpu.memory_space<vmem>>, %arg2: memref<16x128xf32, #tpu.memory_space<vmem>>, %arg3: memref<128x128xf32, #tpu.memory_space<vmem>>, %arg4: memref<3x128xf32, #tpu.memory_space<vmem>>, %arg5: memref<16x128xf32, #tpu.memory_space<vmem>>) attributes {dimension_semantics = [#tpu.dimension_semantics<parallel>], iteration_bounds = array<i64: 1>, scalar_prefetch = 0 : i64, scratch_operands = 0 : i64, tpu.core_type = #tpu.core_type<tc>, window_params = [{transform_indices = @transform_0, window_bounds = array<i64: 16, 128>}, {transform_indices = @transform_1, window_bounds = array<i64: 16, 128>}, {pipeline_mode = #tpu.pipeline_mode<synchronous>, transform_indices = @transform_2, window_bounds = array<i64: 128, 128>}, {pipeline_mode = #tpu.pipeline_mode<synchronous>, transform_indices = @transform_3, window_bounds = array<i64: 3, 128>}, {transform_indices = @transform_4, window_bounds = array<i64: 16, 128>}]} {
    %c0 = arith.constant 0 : index
    %c0_0 = arith.constant 0 : index
    %0 = vector.load %arg4[%c0, %c0_0] : memref<3x128xf32, #tpu.memory_space<vmem>>, vector<3x128xf32>
    %1 = vector.extract_strided_slice %0 {offsets = [0, 0], sizes = [1, 128], strides = [1, 1]} : vector<3x128xf32> to vector<1x128xf32>
    %2 = vector.extract_strided_slice %0 {offsets = [1, 0], sizes = [1, 128], strides = [1, 1]} : vector<3x128xf32> to vector<1x128xf32>
    %3 = vector.extract_strided_slice %0 {offsets = [2, 0], sizes = [1, 128], strides = [1, 1]} : vector<3x128xf32> to vector<1x128xf32>
    %c0_1 = arith.constant 0 : index
    %c0_2 = arith.constant 0 : index
    %4 = vector.load %arg1[%c0_1, %c0_2] : memref<16x128xf32, #tpu.memory_space<vmem>>, vector<16x128xf32>
    %c0_3 = arith.constant 0 : index
    %c0_4 = arith.constant 0 : index
    %5 = vector.load %arg3[%c0_3, %c0_4] : memref<128x128xf32, #tpu.memory_space<vmem>>, vector<128x128xf32>
    %cst = arith.constant dense<0.000000e+00> : vector<16x128xf32>
    %6 = tpu.matmul %4, %5, %cst {dimension_numbers = #tpu.dot_dimension_numbers<[1], [1], [0], [0], [0, 0, 1, 0], [], []>} : vector<16x128xf32>, vector<128x128xf32>, vector<16x128xf32> -> vector<16x128xf32>
    %7 = vector.broadcast %1 : vector<1x128xf32> to vector<16x128xf32>
    %8 = arith.addf %6, %7 : vector<16x128xf32>
    %c0_5 = arith.constant 0 : index
    %c0_6 = arith.constant 0 : index
    %9 = vector.load %arg2[%c0_5, %c0_6] : memref<16x128xf32, #tpu.memory_space<vmem>>, vector<16x128xf32>
    %10 = arith.addf %8, %9 : vector<16x128xf32>
    %cst_7 = arith.constant dense<0.000000e+00> : vector<16xf32>
    %11 = vector.multi_reduction <add>, %10, %cst_7 [1] : vector<16x128xf32> to vector<16xf32>
    %12 = vector.shape_cast %11 : vector<16xf32> to vector<16x1xf32>
    %cst_8 = arith.constant 1.280000e+02 : f32
    %13 = vector.broadcast %cst_8 : f32 to vector<16x1xf32>
    %14 = arith.divf %12, %13 : vector<16x1xf32>
    %15 = vector.broadcast %14 : vector<16x1xf32> to vector<16x128xf32>
    %16 = arith.subf %10, %15 : vector<16x128xf32>
    %17 = arith.mulf %16, %16 : vector<16x128xf32>
    %cst_9 = arith.constant dense<0.000000e+00> : vector<16xf32>
    %18 = vector.multi_reduction <add>, %17, %cst_9 [1] : vector<16x128xf32> to vector<16xf32>
    %19 = vector.shape_cast %18 : vector<16xf32> to vector<16x1xf32>
    %cst_10 = arith.constant 1.280000e+02 : f32
    %20 = vector.broadcast %cst_10 : f32 to vector<16x1xf32>
    %21 = arith.divf %19, %20 : vector<16x1xf32>
    %cst_11 = arith.constant 9.99999996E-13 : f32
    %22 = vector.broadcast %cst_11 : f32 to vector<16x1xf32>
    %23 = arith.addf %21, %22 : vector<16x1xf32>
    %24 = math.rsqrt %23 : vector<16x1xf32>
    %25 = vector.broadcast %24 : vector<16x1xf32> to vector<16x128xf32>
    %26 = arith.mulf %16, %25 : vector<16x128xf32>
    %27 = vector.broadcast %2 : vector<1x128xf32> to vector<16x128xf32>
    %28 = arith.mulf %26, %27 : vector<16x128xf32>
    %29 = vector.broadcast %3 : vector<1x128xf32> to vector<16x128xf32>
    %30 = arith.addf %28, %29 : vector<16x128xf32>
    %c0_12 = arith.constant 0 : index
    %c0_13 = arith.constant 0 : index
    %31 = vector.load %arg5[%c0_12, %c0_13] : memref<16x128xf32, #tpu.memory_space<vmem>>, vector<16x128xf32>
    tpu.vector_store %arg5[%c0_12, %c0_13], %30 {strides = array<i32>} : memref<16x128xf32, #tpu.memory_space<vmem>>, vector<16x128xf32>,
    return
  }
  func.func @transform_0(%arg0: i32) -> (i32, i32) {
    %c0_i32 = arith.constant 0 : i32
    %c0_i32_0 = arith.constant 0 : i32
    return %arg0, %c0_i32 : i32, i32
  }
  func.func @transform_1(%arg0: i32) -> (i32, i32) {
    %c0_i32 = arith.constant 0 : i32
    %c0_i32_0 = arith.constant 0 : i32
    return %arg0, %c0_i32 : i32, i32
  }
  func.func @transform_2(%arg0: i32) -> (i32, i32) {
    %c0_i32 = arith.constant 0 : i32
    %c0_i32_0 = arith.constant 0 : i32
    %c0_i32_1 = arith.constant 0 : i32
    return %c0_i32, %c0_i32_0 : i32, i32
  }
  func.func @transform_3(%arg0: i32) -> (i32, i32) {
    %c0_i32 = arith.constant 0 : i32
    %c0_i32_0 = arith.constant 0 : i32
    %c0_i32_1 = arith.constant 0 : i32
    return %c0_i32, %c0_i32_0 : i32, i32
  }
  func.func @transform_4(%arg0: i32) -> (i32, i32) {
    %c0_i32 = arith.constant 0 : i32
    %c0_i32_0 = arith.constant 0 : i32
    return %arg0, %c0_i32 : i32, i32
  }
}

module attributes {stable_mosaic.version = 11 : i64} {
  func.func @bert_self_output_kernel(%arg0: i32, %arg1: memref<16x128xf32, #tpu.memory_space<vmem>>, %arg2: memref<16x128xf32, #tpu.memory_space<vmem>>, %arg3: memref<128x128xf32, #tpu.memory_space<vmem>>, %arg4: memref<3x128xf32, #tpu.memory_space<vmem>>, %arg5: memref<16x128xf32, #tpu.memory_space<vmem>>) attributes {dimension_semantics = [#tpu.dimension_semantics<parallel>], iteration_bounds = array<i64: 1>, scalar_prefetch = 0 : i64, scratch_operands = 0 : i64, tpu.core_type = #tpu.core_type<tc>, window_params = [{transform_indices = @transform_0, window_bounds = array<i64: 16, 128>}, {transform_indices = @transform_1, window_bounds = array<i64: 16, 128>}, {pipeline_mode = #tpu.pipeline_mode<synchronous>, transform_indices = @transform_2, window_bounds = array<i64: 128, 128>}, {pipeline_mode = #tpu.pipeline_mode<synchronous>, transform_indices = @transform_3, window_bounds = array<i64: 3, 128>}, {transform_indices = @transform_4, window_bounds = array<i64: 16, 128>}]} {
    %c0 = arith.constant 0 : index
    %c0_0 = arith.constant 0 : index
    %0 = vector.load %arg4[%c0, %c0_0] : memref<3x128xf32, #tpu.memory_space<vmem>>, vector<3x128xf32>
    %1 = vector.extract_strided_slice %0 {offsets = [0, 0], sizes = [1, 128], strides = [1, 1]} : vector<3x128xf32> to vector<1x128xf32>
    %2 = vector.extract_strided_slice %0 {offsets = [1, 0], sizes = [1, 128], strides = [1, 1]} : vector<3x128xf32> to vector<1x128xf32>
    %3 = vector.extract_strided_slice %0 {offsets = [2, 0], sizes = [1, 128], strides = [1, 1]} : vector<3x128xf32> to vector<1x128xf32>
    %c0_1 = arith.constant 0 : index
    %c0_2 = arith.constant 0 : index
    %4 = vector.load %arg1[%c0_1, %c0_2] : memref<16x128xf32, #tpu.memory_space<vmem>>, vector<16x128xf32>
    %c0_3 = arith.constant 0 : index
    %c0_4 = arith.constant 0 : index
    %5 = vector.load %arg3[%c0_3, %c0_4] : memref<128x128xf32, #tpu.memory_space<vmem>>, vector<128x128xf32>
    %cst = arith.constant dense<0.000000e+00> : vector<16x128xf32>
    %6 = tpu.matmul %4, %5, %cst {dimension_numbers = #tpu.dot_dimension_numbers<[1], [1], [0], [0], [0, 0, 1, 0], [], []>} : vector<16x128xf32>, vector<128x128xf32>, vector<16x128xf32> -> vector<16x128xf32>
    %7 = vector.broadcast %1 : vector<1x128xf32> to vector<16x128xf32>
    %8 = arith.addf %6, %7 : vector<16x128xf32>
    %c0_5 = arith.constant 0 : index
    %c0_6 = arith.constant 0 : index
    %9 = vector.load %arg2[%c0_5, %c0_6] : memref<16x128xf32, #tpu.memory_space<vmem>>, vector<16x128xf32>
    %10 = arith.addf %8, %9 : vector<16x128xf32>
    %cst_7 = arith.constant dense<0.000000e+00> : vector<16xf32>
    %11 = vector.multi_reduction <add>, %10, %cst_7 [1] : vector<16x128xf32> to vector<16xf32>
    %12 = vector.shape_cast %11 : vector<16xf32> to vector<16x1xf32>
    %cst_8 = arith.constant 1.280000e+02 : f32
    %13 = vector.broadcast %cst_8 : f32 to vector<16x1xf32>
    %14 = arith.divf %12, %13 : vector<16x1xf32>
    %15 = vector.broadcast %14 : vector<16x1xf32> to vector<16x128xf32>
    %16 = arith.subf %10, %15 : vector<16x128xf32>
    %17 = arith.mulf %16, %16 : vector<16x128xf32>
    %cst_9 = arith.constant dense<0.000000e+00> : vector<16xf32>
    %18 = vector.multi_reduction <add>, %17, %cst_9 [1] : vector<16x128xf32> to vector<16xf32>
    %19 = vector.shape_cast %18 : vector<16xf32> to vector<16x1xf32>
    %cst_10 = arith.constant 1.280000e+02 : f32
    %20 = vector.broadcast %cst_10 : f32 to vector<16x1xf32>
    %21 = arith.divf %19, %20 : vector<16x1xf32>
    %cst_11 = arith.constant 9.99999996E-13 : f32
    %22 = vector.broadcast %cst_11 : f32 to vector<16x1xf32>
    %23 = arith.addf %21, %22 : vector<16x1xf32>
    %24 = math.rsqrt %23 : vector<16x1xf32>
    %25 = vector.broadcast %24 : vector<16x1xf32> to vector<16x128xf32>
    %26 = arith.mulf %16, %25 : vector<16x128xf32>
    %27 = vector.broadcast %2 : vector<1x128xf32> to vector<16x128xf32>
    %28 = arith.mulf %26, %27 : vector<16x128xf32>
    %29 = vector.broadcast %3 : vector<1x128xf32> to vector<16x128xf32>
    %30 = arith.addf %28, %29 : vector<16x128xf32>
    %c0_12 = arith.constant 0 : index
    %c0_13 = arith.constant 0 : index
    %31 = vector.load %arg5[%c0_12, %c0_13] : memref<16x128xf32, #tpu.memory_space<vmem>>, vector<16x128xf32>
    tpu.vector_store %arg5[%c0_12, %c0_13], %30 {strides = array<i32>} : memref<16x128xf32, #tpu.memory_space<vmem>>, vector<16x128xf32>,
    return
  }
  func.func @transform_0(%arg0: i32) -> (i32, i32) {
    %c0_i32 = arith.constant 0 : i32
    %c0_i32_0 = arith.constant 0 : i32
    return %arg0, %c0_i32 : i32, i32
  }
  func.func @transform_1(%arg0: i32) -> (i32, i32) {
    %c0_i32 = arith.constant 0 : i32
    %c0_i32_0 = arith.constant 0 : i32
    return %arg0, %c0_i32 : i32, i32
  }
  func.func @transform_2(%arg0: i32) -> (i32, i32) {
    %c0_i32 = arith.constant 0 : i32
    %c0_i32_0 = arith.constant 0 : i32
    %c0_i32_1 = arith.constant 0 : i32
    return %c0_i32, %c0_i32_0 : i32, i32
  }
  func.func @transform_3(%arg0: i32) -> (i32, i32) {
    %c0_i32 = arith.constant 0 : i32
    %c0_i32_0 = arith.constant 0 : i32
    %c0_i32_1 = arith.constant 0 : i32
    return %c0_i32, %c0_i32_0 : i32, i32
  }
  func.func @transform_4(%arg0: i32) -> (i32, i32) {
    %c0_i32 = arith.constant 0 : i32
    %c0_i32_0 = arith.constant 0 : i32
    return %arg0, %c0_i32 : i32, i32
  }
}

</mosaic_0001>

<llo_original>
// kernel: tpu_custom_call.1
$region0: #{tpu_custom_call.1}
  #allocation0 [shape = 'u32[]', space=smem, size = 0x4, offset = 0x4, fixed_abs, tag = 'smem constant byte address 0x4 - core index']
  #allocation1 [shape = 'u32[144,128]{1,0:T(1,128)}', space=vmem, size = 0x12000, scoped, tag = 'internal scratch']
  %s0 = inlined_call_operand.hbm [shape: f32[16,128], index: 0, kind: input, shape index: {}]
  %s1 = inlined_call_operand.hbm [shape: f32[16,128], index: 1, kind: input, shape index: {}]
  %s2 = inlined_call_operand.hbm [shape: f32[128,128], index: 2, kind: input, shape index: {}]
  %s3 = inlined_call_operand.vmem [shape: f32[3,128], index: 3, kind: input, shape index: {}]
  %s4 = inlined_call_operand.hbm [shape: f32[16,128], index: 4, kind: output, shape index: {}]
  %s5 = sld [smem:[#allocation0]]
  $region38: #{tpu_custom_call.1} parent=0
    _
  %s7 = ssub.s32 1, %s5
  %s8 = scalar_select 0, %s7, %s5
  $region1: #{tpu_custom_call.1} parent=0
    #allocation2 [shape = 'u8[8192]{0}', space=vmem, size = 0x2000, scoped, tag = 'input window, operand 0, single buffered']
    #allocation3 [shape = 's32[1]{0}', space=sflag, size = 0x4, scoped, tag = 'scoped memory for tpu_custom_call.1']
    #allocation4 [shape = 's32[1]{0}', space=sflag, size = 0x4, scoped, tag = 'scoped memory for tpu_custom_call.1']
    #allocation5 [shape = 'u8[8192]{0}', space=vmem, size = 0x2000, scoped, tag = 'input window, operand 1, single buffered']
    #allocation6 [shape = 's32[1]{0}', space=sflag, size = 0x4, scoped, tag = 'scoped memory for tpu_custom_call.1']
    #allocation7 [shape = 'u8[65536]{0}', space=vmem, size = 0x10000, scoped, tag = 'input window, operand 2, single buffered']
    #allocation8 [shape = 'u8[8192]{0}', space=vmem, size = 0x2000, scoped, tag = 'output window, operand 0, single buffered']
    %9 = vsyncpa [#allocation3], 0
    %10 = vsyncpa [#allocation6], 0
    %11 = vsyncpa [#allocation4], 0
    // Predicated region
    $region2: #{tpu_custom_call.1} parent=1 // pred_check
      _
    $region3: #{tpu_custom_call.1} parent=1 // pred_check_branch
      %13 = sbr.rel (0) target = $region5
    $region4: #{tpu_custom_call.1} parent=1 // pred_region
      %s15 = ssub.s32 256, 256
      %16 = vsyncadd [#allocation3], %s15
      %s17 = sshll.u32 [#allocation2], 4
      %s18 = int_to_ptr.vmem [resolvable:$true] %s17
      %23 = dma.hbm_to_vmem [thread:$0]  %s0, 256, %s18, [#allocation3], 128, 128, 8
    $region5: #{tpu_custom_call.1} parent=1 // pred_fallthru
      _
    // Predicated region
    $region6: #{tpu_custom_call.1} parent=1 // pred_check
      _
    $region7: #{tpu_custom_call.1} parent=1 // pred_check_branch
      %25 = sbr.rel (0) target = $region9
    $region8: #{tpu_custom_call.1} parent=1 // pred_region
      %s27 = ssub.s32 256, 256
      %28 = vsyncadd [#allocation6], %s27
      %s29 = sshll.u32 [#allocation5], 4
      %s30 = int_to_ptr.vmem [resolvable:$true] %s29
      %35 = dma.hbm_to_vmem [thread:$0]  %s1, 256, %s30, [#allocation6], 128, 128, 8
    $region9: #{tpu_custom_call.1} parent=1 // pred_fallthru
      _
    // Predicated region
    $region10: #{tpu_custom_call.1} parent=1 // pred_check
      _
    $region11: #{tpu_custom_call.1} parent=1 // pred_check_branch
      %37 = sbr.rel (0) target = $region13
    $region12: #{tpu_custom_call.1} parent=1 // pred_region
      %s39 = ssub.s32 2048, 2048
      %40 = vsyncadd [#allocation6], %s39
      %s41 = sshll.u32 [#allocation7], 4
      %s42 = int_to_ptr.vmem [resolvable:$true] %s41
      %47 = dma.hbm_to_vmem [thread:$0]  %s2, 2048, %s42, [#allocation6], 128, 128, 8
    $region13: #{tpu_custom_call.1} parent=1 // pred_fallthru
      _
    // Predicated region
    $region14: #{tpu_custom_call.1} parent=1 // pred_check
      _
    $region15: #{tpu_custom_call.1} parent=1 // pred_check_branch
      %49 = sbr.rel (0) target = $region17
    $region16: #{tpu_custom_call.1} parent=1 // pred_region
      _
    $region17: #{tpu_custom_call.1} parent=1 // pred_fallthru
      _
    // Predicated region
    $region18: #{tpu_custom_call.1} parent=1 // pred_check
      _
    $region19: #{tpu_custom_call.1} parent=1 // pred_check_branch
      %51 = sbr.rel (0) target = $region21
    $region20: #{tpu_custom_call.1} parent=1 // pred_region
      %52 = dma.done [#allocation3], 256
    $region21: #{tpu_custom_call.1} parent=1 // pred_fallthru
      _
    // Predicated region
    $region22: #{tpu_custom_call.1} parent=1 // pred_check
      _
    $region23: #{tpu_custom_call.1} parent=1 // pred_check_branch
      %54 = sbr.rel (0) target = $region25
    $region24: #{tpu_custom_call.1} parent=1 // pred_region
      %55 = dma.done [#allocation6], 256
    $region25: #{tpu_custom_call.1} parent=1 // pred_fallthru
      _
    // Predicated region
    $region26: #{tpu_custom_call.1} parent=1 // pred_check
      _
    $region27: #{tpu_custom_call.1} parent=1 // pred_check_branch
      %57 = sbr.rel (0) target = $region29
    $region28: #{tpu_custom_call.1} parent=1 // pred_region
      %58 = dma.done [#allocation6], 2048
    $region29: #{tpu_custom_call.1} parent=1 // pred_fallthru
      _
    %v59 = vld [vmem:[%s3] sm:$0x7]
    %v60 = vld [vmem:[#allocation2] sm:$0xff]
    %v61 = vld [vmem:[#allocation2 + $0x8] sm:$0xff]
    %v62 = vld [vmem:[#allocation7] sm:$0xff]
    %v63 = vld [vmem:[#allocation7 + $0x8] sm:$0xff]
    %v64 = vld [vmem:[#allocation7 + $0x10] sm:$0xff]
    %v65 = vld [vmem:[#allocation7 + $0x18] sm:$0xff]
    %v66 = vld [vmem:[#allocation7 + $0x20] sm:$0xff]
    %v67 = vld [vmem:[#allocation7 + $0x28] sm:$0xff]
    %v68 = vld [vmem:[#allocation7 + $0x30] sm:$0xff]
    %v69 = vld [vmem:[#allocation7 + $0x38] sm:$0xff]
    %v70 = vld [vmem:[#allocation7 + $0x40] sm:$0xff]
    %v71 = vld [vmem:[#allocation7 + $0x48] sm:$0xff]
    %v72 = vld [vmem:[#allocation7 + $0x50] sm:$0xff]
    %v73 = vld [vmem:[#allocation7 + $0x58] sm:$0xff]
    %v74 = vld [vmem:[#allocation7 + $0x60] sm:$0xff]
    %v75 = vld [vmem:[#allocation7 + $0x68] sm:$0xff]
    %v76 = vld [vmem:[#allocation7 + $0x70] sm:$0xff]
    %v77 = vld [vmem:[#allocation7 + $0x78] sm:$0xff]
    %v78 = vlaneseq
    %v79 = vshrl.u32 %v78, 7
    %v80 = vsub.s32 0, %v79
    %v81 = vrot.slane %v59, %v80
    %82 = vmatprep.subr.mxu0 0.0
    %83 = vmatpush1.xpose.msra.mxu0 %v62
    %84 = vmatprep.subr.mxu0 0.0
    %85 = vmatpush1.xpose.msra.mxu0 %v63
    %86 = vmatprep.subr.mxu0 0.0
    %87 = vmatpush1.xpose.msra.mxu0 %v64
    %88 = vmatprep.subr.mxu0 0.0
    %89 = vmatpush1.xpose.msra.mxu0 %v65
    %90 = vmatprep.subr.mxu0 0.0
    %91 = vmatpush1.xpose.msra.mxu0 %v66
    %92 = vmatprep.subr.mxu0 0.0
    %93 = vmatpush1.xpose.msra.mxu0 %v67
    %94 = vmatprep.subr.mxu0 0.0
    %95 = vmatpush1.xpose.msra.mxu0 %v68
    %96 = vmatprep.subr.mxu0 0.0
    %97 = vmatpush1.xpose.msra.mxu0 %v69
    %98 = vmatprep.subr.mxu0 0.0
    %99 = vmatpush1.xpose.msra.mxu0 %v70
    %100 = vmatprep.subr.mxu0 0.0
    %101 = vmatpush1.xpose.msra.mxu0 %v71
    %102 = vmatprep.subr.mxu0 0.0
    %103 = vmatpush1.xpose.msra.mxu0 %v72
    %104 = vmatprep.subr.mxu0 0.0
    %105 = vmatpush1.xpose.msra.mxu0 %v73
    %106 = vmatprep.subr.mxu0 0.0
    %107 = vmatpush1.xpose.msra.mxu0 %v74
    %108 = vmatprep.subr.mxu0 0.0
    %109 = vmatpush1.xpose.msra.mxu0 %v75
    %110 = vmatprep.subr.mxu0 0.0
    %111 = vmatpush1.xpose.msra.mxu0 %v76
    %112 = vmatprep.subr.mxu0 0.0
    %113 = vmatpush1.xpose.msra.mxu0 %v77
    %114 = vmatprep.subr.mxu0 0.0
    %115 = vmatpush1.xpose.msra.mxu0 0.0
    %116 = vmatprep.subr.mxu0 0.0
    %117 = vmatpush1.xpose.msra.mxu0 0.0
    %118 = vmatprep.subr.mxu0 0.0
    %119 = vmatpush1.xpose.msra.mxu0 0.0
    %120 = vmatprep.subr.mxu0 0.0
    %121 = vmatpush1.xpose.msra.mxu0 0.0
    %122 = vmatprep.subr.mxu0 0.0
    %123 = vmatpush1.xpose.msra.mxu0 0.0
    %124 = vmatprep.subr.mxu0 0.0
    %125 = vmatpush1.xpose.msra.mxu0 0.0
    %126 = vmatprep.subr.mxu0 0.0
    %127 = vmatpush1.xpose.msra.mxu0 0.0
    %128 = vmatprep.subr.mxu0 0.0
    %129 = vmatpush1.xpose.msra.mxu0 0.0
    %130 = vmatprep.subr.mxu0 0.0
    %131 = vmatpush1.xpose.msra.mxu0 0.0
    %132 = vmatprep.subr.mxu0 0.0
    %133 = vmatpush1.xpose.msra.mxu0 0.0
    %134 = vmatprep.subr.mxu0 0.0
    %135 = vmatpush1.xpose.msra.mxu0 0.0
    %136 = vmatprep.subr.mxu0 0.0
    %137 = vmatpush1.xpose.msra.mxu0 0.0
    %138 = vmatprep.subr.mxu0 0.0
    %139 = vmatpush1.xpose.msra.mxu0 0.0
    %140 = vmatprep.subr.mxu0 0.0
    %141 = vmatpush1.xpose.msra.mxu0 0.0
    %142 = vmatprep.subr.mxu0 0.0
    %143 = vmatpush1.xpose.msra.mxu0 0.0
    %144 = vmatprep.subr.mxu0 0.0
    %145 = vmatpush1.xpose.msra.mxu0 0.0
    %146 = vmatprep.mubr.f32.mxu0 0.0
    %147 = vmatmul.mubr.f32.gmra.mrb[0].mxu0 %v60
    %v148 = vpop.f32.mrb[0].mxu0
    %v149 = vadd.f32 %v81, %v148
    %v150 = vpop.f32.mrb[0].mxu0
    %151 = vmatprep.mubr.f32.mxu0 0.0
    %152 = vmatmul.mubr.f32.gmra.mrb[0].mxu0 %v61
    %v153 = vpop.f32.mrb[0].mxu0
    %v154 = vadd.f32 %v81, %v153
    %v155 = vpop.f32.mrb[0].mxu0
    %156 = vdwg.mxu0
    %v157 = vld [vmem:[#allocation5] sm:$0xff]
    %v158 = vld [vmem:[#allocation5 + $0x8] sm:$0xff]
    %v159 = vadd.f32 %v149, %v157
    %v160 = vadd.f32 %v154, %v158
    %161 = vadd.xlane.f32.xlu0 %v159
    %v162 = vpop.xlane.xlu0 %161
    %163 = vadd.xlane.f32.xlu0 %v160
    %v164 = vpop.xlane.xlu0 %163
    %v165 = vrcp.pop 128.0
    %v166 = vmul.f32 %v162, %v165
    %v167 = vmul.f32 %v164, %v165
    %v168 = vsub.f32 %v159, %v166
    %v169 = vsub.f32 %v160, %v167
    %v170 = vmul.f32 %v168, %v168
    %v171 = vmul.f32 %v169, %v169
    %172 = vadd.xlane.f32.xlu0 %v170
    %v173 = vpop.xlane.xlu0 %172
    %174 = vadd.xlane.f32.xlu0 %v171
    %v175 = vpop.xlane.xlu0 %174
    %v176 = vmul.f32 %v173, %v165
    %v177 = vmul.f32 %v175, %v165
    %v178 = vadd.f32 %v176, 1e-12
    %v179 = vadd.f32 %v177, 1e-12
    %v180 = vrsqrt.pop %v178
    %v181 = vrsqrt.pop %v179
    %v182 = vmul.f32 %v168, %v180
    %v183 = vmul.f32 %v169, %v181
    %v184 = vlaneseq
    %v185 = vshrl.u32 %v184, 7
    %v186 = vsub.s32 1, %v185
    %v187 = vrot.slane %v59, %v186
    %v188 = vmul.f32 %v182, %v187
    %v189 = vmul.f32 %v183, %v187
    %v190 = vlaneseq
    %v191 = vshrl.u32 %v190, 7
    %v192 = vsub.s32 2, %v191
    %v193 = vrot.slane %v59, %v192
    %v194 = vadd.f32 %v188, %v193
    %v195 = vadd.f32 %v189, %v193
    %196 = vst [vmem:[#allocation8] sm:$0xff] %v194
    %197 = vst [vmem:[#allocation8 + $0x8] sm:$0xff] %v195
    // Predicated region
    $region30: #{tpu_custom_call.1} parent=1 // pred_check
      _
    $region31: #{tpu_custom_call.1} parent=1 // pred_check_branch
      %199 = sbr.rel (0) target = $region33
    $region32: #{tpu_custom_call.1} parent=1 // pred_region
      %s201 = ssub.s32 256, 256
      %202 = vsyncadd [#allocation4], %s201
      %s203 = sshll.u32 [#allocation8], 4
      %s204 = int_to_ptr.vmem [resolvable:$true] %s203
      %209 = dma.vmem_to_hbm [thread:$0]  %s204, 256, %s4, [#allocation4], 128, 128, 8
    $region33: #{tpu_custom_call.1} parent=1 // pred_fallthru
      _
    // Predicated region
    $region34: #{tpu_custom_call.1} parent=1 // pred_check
      _
    $region35: #{tpu_custom_call.1} parent=1 // pred_check_branch
      %211 = sbr.rel (0) target = $region37
    $region36: #{tpu_custom_call.1} parent=1 // pred_region
      %212 = dma.done [#allocation4], 256
    $region37: #{tpu_custom_call.1} parent=1 // pred_fallthru
      _
    %213 = vsyncpa [#allocation3], 1
    %214 = vsyncpa [#allocation6], 1
    %215 = vsyncpa [#allocation4], 1

// kernel: tpu_custom_call.1
$region0: #{tpu_custom_call.1}
  #allocation0 [shape = 'u32[]', space=smem, size = 0x4, offset = 0x4, fixed_abs, tag = 'smem constant byte address 0x4 - core index']
  #allocation1 [shape = 'u32[144,128]{1,0:T(1,128)}', space=vmem, size = 0x12000, scoped, tag = 'internal scratch']
  %s0 = inlined_call_operand.hbm [shape: f32[16,128], index: 0, kind: input, shape index: {}]
  %s1 = inlined_call_operand.hbm [shape: f32[16,128], index: 1, kind: input, shape index: {}]
  %s2 = inlined_call_operand.hbm [shape: f32[128,128], index: 2, kind: input, shape index: {}]
  %s3 = inlined_call_operand.vmem [shape: f32[3,128], index: 3, kind: input, shape index: {}]
  %s4 = inlined_call_operand.hbm [shape: f32[16,128], index: 4, kind: output, shape index: {}]
  %s5 = sld [smem:[#allocation0]]
  $region38: #{tpu_custom_call.1} parent=0
    _
  %s7 = ssub.s32 1, %s5
  %s8 = scalar_select 0, %s7, %s5
  $region1: #{tpu_custom_call.1} parent=0
    #allocation2 [shape = 'u8[8192]{0}', space=vmem, size = 0x2000, scoped, tag = 'input window, operand 0, single buffered']
    #allocation3 [shape = 's32[1]{0}', space=sflag, size = 0x4, scoped, tag = 'scoped memory for tpu_custom_call.1']
    #allocation4 [shape = 's32[1]{0}', space=sflag, size = 0x4, scoped, tag = 'scoped memory for tpu_custom_call.1']
    #allocation5 [shape = 'u8[8192]{0}', space=vmem, size = 0x2000, scoped, tag = 'input window, operand 1, single buffered']
    #allocation6 [shape = 's32[1]{0}', space=sflag, size = 0x4, scoped, tag = 'scoped memory for tpu_custom_call.1']
    #allocation7 [shape = 'u8[65536]{0}', space=vmem, size = 0x10000, scoped, tag = 'input window, operand 2, single buffered']
    #allocation8 [shape = 'u8[8192]{0}', space=vmem, size = 0x2000, scoped, tag = 'output window, operand 0, single buffered']
    %9 = vsyncpa [#allocation3], 0
    %10 = vsyncpa [#allocation6], 0
    %11 = vsyncpa [#allocation4], 0
    // Predicated region
    $region2: #{tpu_custom_call.1} parent=1 // pred_check
      _
    $region3: #{tpu_custom_call.1} parent=1 // pred_check_branch
      %13 = sbr.rel (0) target = $region5
    $region4: #{tpu_custom_call.1} parent=1 // pred_region
      %s15 = ssub.s32 256, 256
      %16 = vsyncadd [#allocation3], %s15
      %s17 = sshll.u32 [#allocation2], 4
      %s18 = int_to_ptr.vmem [resolvable:$true] %s17
      %23 = dma.hbm_to_vmem [thread:$0]  %s0, 256, %s18, [#allocation3], 128, 128, 8
    $region5: #{tpu_custom_call.1} parent=1 // pred_fallthru
      _
    // Predicated region
    $region6: #{tpu_custom_call.1} parent=1 // pred_check
      _
    $region7: #{tpu_custom_call.1} parent=1 // pred_check_branch
      %25 = sbr.rel (0) target = $region9
    $region8: #{tpu_custom_call.1} parent=1 // pred_region
      %s27 = ssub.s32 256, 256
      %28 = vsyncadd [#allocation6], %s27
      %s29 = sshll.u32 [#allocation5], 4
      %s30 = int_to_ptr.vmem [resolvable:$true] %s29
      %35 = dma.hbm_to_vmem [thread:$0]  %s1, 256, %s30, [#allocation6], 128, 128, 8
    $region9: #{tpu_custom_call.1} parent=1 // pred_fallthru
      _
    // Predicated region
    $region10: #{tpu_custom_call.1} parent=1 // pred_check
      _
    $region11: #{tpu_custom_call.1} parent=1 // pred_check_branch
      %37 = sbr.rel (0) target = $region13
    $region12: #{tpu_custom_call.1} parent=1 // pred_region
      %s39 = ssub.s32 2048, 2048
      %40 = vsyncadd [#allocation6], %s39
      %s41 = sshll.u32 [#allocation7], 4
      %s42 = int_to_ptr.vmem [resolvable:$true] %s41
      %47 = dma.hbm_to_vmem [thread:$0]  %s2, 2048, %s42, [#allocation6], 128, 128, 8
    $region13: #{tpu_custom_call.1} parent=1 // pred_fallthru
      _
    // Predicated region
    $region14: #{tpu_custom_call.1} parent=1 // pred_check
      _
    $region15: #{tpu_custom_call.1} parent=1 // pred_check_branch
      %49 = sbr.rel (0) target = $region17
    $region16: #{tpu_custom_call.1} parent=1 // pred_region
      _
    $region17: #{tpu_custom_call.1} parent=1 // pred_fallthru
      _
    // Predicated region
    $region18: #{tpu_custom_call.1} parent=1 // pred_check
      _
    $region19: #{tpu_custom_call.1} parent=1 // pred_check_branch
      %51 = sbr.rel (0) target = $region21
    $region20: #{tpu_custom_call.1} parent=1 // pred_region
      %52 = dma.done [#allocation3], 256
    $region21: #{tpu_custom_call.1} parent=1 // pred_fallthru
      _
    // Predicated region
    $region22: #{tpu_custom_call.1} parent=1 // pred_check
      _
    $region23: #{tpu_custom_call.1} parent=1 // pred_check_branch
      %54 = sbr.rel (0) target = $region25
    $region24: #{tpu_custom_call.1} parent=1 // pred_region
      %55 = dma.done [#allocation6], 256
    $region25: #{tpu_custom_call.1} parent=1 // pred_fallthru
      _
    // Predicated region
    $region26: #{tpu_custom_call.1} parent=1 // pred_check
      _
    $region27: #{tpu_custom_call.1} parent=1 // pred_check_branch
      %57 = sbr.rel (0) target = $region29
    $region28: #{tpu_custom_call.1} parent=1 // pred_region
      %58 = dma.done [#allocation6], 2048
    $region29: #{tpu_custom_call.1} parent=1 // pred_fallthru
      _
    %v59 = vld [vmem:[%s3] sm:$0x7]
    %v60 = vld [vmem:[#allocation2] sm:$0xff]
    %v61 = vld [vmem:[#allocation2 + $0x8] sm:$0xff]
    %v62 = vld [vmem:[#allocation7] sm:$0xff]
    %v63 = vld [vmem:[#allocation7 + $0x8] sm:$0xff]
    %v64 = vld [vmem:[#allocation7 + $0x10] sm:$0xff]
    %v65 = vld [vmem:[#allocation7 + $0x18] sm:$0xff]
    %v66 = vld [vmem:[#allocation7 + $0x20] sm:$0xff]
    %v67 = vld [vmem:[#allocation7 + $0x28] sm:$0xff]
    %v68 = vld [vmem:[#allocation7 + $0x30] sm:$0xff]
    %v69 = vld [vmem:[#allocation7 + $0x38] sm:$0xff]
    %v70 = vld [vmem:[#allocation7 + $0x40] sm:$0xff]
    %v71 = vld [vmem:[#allocation7 + $0x48] sm:$0xff]
    %v72 = vld [vmem:[#allocation7 + $0x50] sm:$0xff]
    %v73 = vld [vmem:[#allocation7 + $0x58] sm:$0xff]
    %v74 = vld [vmem:[#allocation7 + $0x60] sm:$0xff]
    %v75 = vld [vmem:[#allocation7 + $0x68] sm:$0xff]
    %v76 = vld [vmem:[#allocation7 + $0x70] sm:$0xff]
    %v77 = vld [vmem:[#allocation7 + $0x78] sm:$0xff]
    %v78 = vlaneseq
    %v79 = vshrl.u32 %v78, 7
    %v80 = vsub.s32 0, %v79
    %v81 = vrot.slane %v59, %v80
    %82 = vmatprep.subr.mxu0 0.0
    %83 = vmatpush1.xpose.msra.mxu0 %v62
    %84 = vmatprep.subr.mxu0 0.0
    %85 = vmatpush1.xpose.msra.mxu0 %v63
    %86 = vmatprep.subr.mxu0 0.0
    %87 = vmatpush1.xpose.msra.mxu0 %v64
    %88 = vmatprep.subr.mxu0 0.0
    %89 = vmatpush1.xpose.msra.mxu0 %v65
    %90 = vmatprep.subr.mxu0 0.0
    %91 = vmatpush1.xpose.msra.mxu0 %v66
    %92 = vmatprep.subr.mxu0 0.0
    %93 = vmatpush1.xpose.msra.mxu0 %v67
    %94 = vmatprep.subr.mxu0 0.0
    %95 = vmatpush1.xpose.msra.mxu0 %v68
    %96 = vmatprep.subr.mxu0 0.0
    %97 = vmatpush1.xpose.msra.mxu0 %v69
    %98 = vmatprep.subr.mxu0 0.0
    %99 = vmatpush1.xpose.msra.mxu0 %v70
    %100 = vmatprep.subr.mxu0 0.0
    %101 = vmatpush1.xpose.msra.mxu0 %v71
    %102 = vmatprep.subr.mxu0 0.0
    %103 = vmatpush1.xpose.msra.mxu0 %v72
    %104 = vmatprep.subr.mxu0 0.0
    %105 = vmatpush1.xpose.msra.mxu0 %v73
    %106 = vmatprep.subr.mxu0 0.0
    %107 = vmatpush1.xpose.msra.mxu0 %v74
    %108 = vmatprep.subr.mxu0 0.0
    %109 = vmatpush1.xpose.msra.mxu0 %v75
    %110 = vmatprep.subr.mxu0 0.0
    %111 = vmatpush1.xpose.msra.mxu0 %v76
    %112 = vmatprep.subr.mxu0 0.0
    %113 = vmatpush1.xpose.msra.mxu0 %v77
    %114 = vmatprep.subr.mxu0 0.0
    %115 = vmatpush1.xpose.msra.mxu0 0.0
    %116 = vmatprep.subr.mxu0 0.0
    %117 = vmatpush1.xpose.msra.mxu0 0.0
    %118 = vmatprep.subr.mxu0 0.0
    %119 = vmatpush1.xpose.msra.mxu0 0.0
    %120 = vmatprep.subr.mxu0 0.0
    %121 = vmatpush1.xpose.msra.mxu0 0.0
    %122 = vmatprep.subr.mxu0 0.0
    %123 = vmatpush1.xpose.msra.mxu0 0.0
    %124 = vmatprep.subr.mxu0 0.0
    %125 = vmatpush1.xpose.msra.mxu0 0.0
    %126 = vmatprep.subr.mxu0 0.0
    %127 = vmatpush1.xpose.msra.mxu0 0.0
    %128 = vmatprep.subr.mxu0 0.0
    %129 = vmatpush1.xpose.msra.mxu0 0.0
    %130 = vmatprep.subr.mxu0 0.0
    %131 = vmatpush1.xpose.msra.mxu0 0.0
    %132 = vmatprep.subr.mxu0 0.0
    %133 = vmatpush1.xpose.msra.mxu0 0.0
    %134 = vmatprep.subr.mxu0 0.0
    %135 = vmatpush1.xpose.msra.mxu0 0.0
    %136 = vmatprep.subr.mxu0 0.0
    %137 = vmatpush1.xpose.msra.mxu0 0.0
    %138 = vmatprep.subr.mxu0 0.0
    %139 = vmatpush1.xpose.msra.mxu0 0.0
    %140 = vmatprep.subr.mxu0 0.0
    %141 = vmatpush1.xpose.msra.mxu0 0.0
    %142 = vmatprep.subr.mxu0 0.0
    %143 = vmatpush1.xpose.msra.mxu0 0.0
    %144 = vmatprep.subr.mxu0 0.0
    %145 = vmatpush1.xpose.msra.mxu0 0.0
    %146 = vmatprep.mubr.f32.mxu0 0.0
    %147 = vmatmul.mubr.f32.gmra.mrb[0].mxu0 %v60
    %v148 = vpop.f32.mrb[0].mxu0
    %v149 = vadd.f32 %v81, %v148
    %v150 = vpop.f32.mrb[0].mxu0
    %151 = vmatprep.mubr.f32.mxu0 0.0
    %152 = vmatmul.mubr.f32.gmra.mrb[0].mxu0 %v61
    %v153 = vpop.f32.mrb[0].mxu0
    %v154 = vadd.f32 %v81, %v153
    %v155 = vpop.f32.mrb[0].mxu0
    %156 = vdwg.mxu0
    %v157 = vld [vmem:[#allocation5] sm:$0xff]
    %v158 = vld [vmem:[#allocation5 + $0x8] sm:$0xff]
    %v159 = vadd.f32 %v149, %v157
    %v160 = vadd.f32 %v154, %v158
    %161 = vadd.xlane.f32.xlu0 %v159
    %v162 = vpop.xlane.xlu0 %161
    %163 = vadd.xlane.f32.xlu0 %v160
    %v164 = vpop.xlane.xlu0 %163
    %v165 = vrcp.pop 128.0
    %v166 = vmul.f32 %v162, %v165
    %v167 = vmul.f32 %v164, %v165
    %v168 = vsub.f32 %v159, %v166
    %v169 = vsub.f32 %v160, %v167
    %v170 = vmul.f32 %v168, %v168
    %v171 = vmul.f32 %v169, %v169
    %172 = vadd.xlane.f32.xlu0 %v170
    %v173 = vpop.xlane.xlu0 %172
    %174 = vadd.xlane.f32.xlu0 %v171
    %v175 = vpop.xlane.xlu0 %174
    %v176 = vmul.f32 %v173, %v165
    %v177 = vmul.f32 %v175, %v165
    %v178 = vadd.f32 %v176, 1e-12
    %v179 = vadd.f32 %v177, 1e-12
    %v180 = vrsqrt.pop %v178
    %v181 = vrsqrt.pop %v179
    %v182 = vmul.f32 %v168, %v180
    %v183 = vmul.f32 %v169, %v181
    %v184 = vlaneseq
    %v185 = vshrl.u32 %v184, 7
    %v186 = vsub.s32 1, %v185
    %v187 = vrot.slane %v59, %v186
    %v188 = vmul.f32 %v182, %v187
    %v189 = vmul.f32 %v183, %v187
    %v190 = vlaneseq
    %v191 = vshrl.u32 %v190, 7
    %v192 = vsub.s32 2, %v191
    %v193 = vrot.slane %v59, %v192
    %v194 = vadd.f32 %v188, %v193
    %v195 = vadd.f32 %v189, %v193
    %196 = vst [vmem:[#allocation8] sm:$0xff] %v194
    %197 = vst [vmem:[#allocation8 + $0x8] sm:$0xff] %v195
    // Predicated region
    $region30: #{tpu_custom_call.1} parent=1 // pred_check
      _
    $region31: #{tpu_custom_call.1} parent=1 // pred_check_branch
      %199 = sbr.rel (0) target = $region33
    $region32: #{tpu_custom_call.1} parent=1 // pred_region
      %s201 = ssub.s32 256, 256
      %202 = vsyncadd [#allocation4], %s201
      %s203 = sshll.u32 [#allocation8], 4
      %s204 = int_to_ptr.vmem [resolvable:$true] %s203
      %209 = dma.vmem_to_hbm [thread:$0]  %s204, 256, %s4, [#allocation4], 128, 128, 8
    $region33: #{tpu_custom_call.1} parent=1 // pred_fallthru
      _
    // Predicated region
    $region34: #{tpu_custom_call.1} parent=1 // pred_check
      _
    $region35: #{tpu_custom_call.1} parent=1 // pred_check_branch
      %211 = sbr.rel (0) target = $region37
    $region36: #{tpu_custom_call.1} parent=1 // pred_region
      %212 = dma.done [#allocation4], 256
    $region37: #{tpu_custom_call.1} parent=1 // pred_fallthru
      _
    %213 = vsyncpa [#allocation3], 1
    %214 = vsyncpa [#allocation6], 1
    %215 = vsyncpa [#allocation4], 1

</llo_original>
